<compile_context>
chip_gen: v7x
topology: tpu7x:2x2x1
jax: 0.10.0
libtpu: 0.0.40
codegen_flags: <defaults>
</compile_context>

<pallas_src>
import functools
import math

import jax
import jax.numpy as jnp
from jax.experimental import pallas as pl
from jax.experimental.pallas import tpu as pltpu

_FP = 128   # output lane padding (49 -> 128) for dense vector stores
_KC = 512   # K-chunk width: columns of x / rows of W fed to the MXU per step


# ---------------------------------------------------------------------------
# Kernel: out = sigmoid(x) @ W_comb + b_comb, K-chunked.
#   x_ref : (TM, D)  bf16     D = Cin*H*W
#   w_ref : (D, 128) bf16
#   b_ref : (1, 128) f32
#   o_ref : (TM, 128) f32
# ---------------------------------------------------------------------------
def _fused_kernel(x_ref, w_ref, b_ref, o_ref):
    tm = x_ref.shape[0]
    d = x_ref.shape[1]
    fp = o_ref.shape[1]

    acc = jnp.zeros((tm, fp), jnp.float32)
    off = 0
    while off < d:                                   # static Python loop (unrolled)
        kc = min(_KC, d - off)
        xc = x_ref[:, pl.ds(off, kc)].astype(jnp.float32)
        # sigmoid(x) = 0.5 * (1 + tanh(x/2)): one EUP transcendental per element
        # (f32 path, works on v5e which has no bf16 EUP/VPU).
        xs = 0.5 * (jnp.tanh(0.5 * xc) + 1.0)
        acc = acc + jnp.dot(xs.astype(jnp.bfloat16),
                            w_ref[pl.ds(off, kc), :],
                            preferred_element_type=jnp.float32)
        off += kc

    o_ref[...] = (acc + b_ref[...]).astype(o_ref.dtype)


# ---------------------------------------------------------------------------
# One-time fold of conv + fc into a single (D, 128) bf16 matrix + f32 bias.
# Call once per weight set and cache the result (hoisted out of the per-call
# forward path).
# ---------------------------------------------------------------------------
def fold_ms_task_params(conv_w, conv_b, fc_w, fc_b):
    Cout, Cin = conv_w.shape[0], conv_w.shape[1]     # (100, Cin, 1, 1)
    Fout, K = fc_w.shape                             # (49, Cout*HW)
    HW = K // Cout                                   # 49
    D = Cin * HW

    conv_w2 = conv_w.reshape(Cout, Cin).astype(jnp.float32)
    fc_w_r = fc_w.reshape(Fout, Cout, HW).astype(jnp.float32)
    # W_comb[cin, hw, o] = sum_cout conv_w2[cout, cin] * fc_w_r[o, cout, hw]
    w_comb = jnp.einsum('kc,okh->cho', conv_w2, fc_w_r).reshape(D, Fout)
    b_comb = fc_b.astype(jnp.float32) + jnp.einsum(
        'k,okh->o', conv_b.astype(jnp.float32), fc_w_r)

    w_comb_p = jnp.zeros((D, _FP), jnp.bfloat16).at[:, :Fout].set(
        w_comb.astype(jnp.bfloat16))
    b_comb_p = jnp.zeros((1, _FP), jnp.float32).at[0, :Fout].set(b_comb)
    return w_comb_p, b_comb_p


# ---------------------------------------------------------------------------
# Row-tile selection from a VMEM budget (fits v5e/v6e/v7x; v7x megacore aware)
# ---------------------------------------------------------------------------
def _pick_tm(N, D):
    budget = 24 * 1024 * 1024                        # conservative working set
    fixed = D * _FP * 2 + _FP * 4                    # resident bf16 W + f32 bias
    per_row = (2 * D * 2                             # double-buffered bf16 x tile
               + _KC * 4                             # live f32 sigmoid chunk
               + 3 * _FP * 4)                        # f32 acc + double-buffered out
    tm = max(8, (budget - fixed) // per_row)
    tm = min(512, (tm // 8) * 8)
    if N >= 16:                                      # v7x: keep >= 2 tiles so the
        tm = min(tm, ((-(-N // 2) + 7) // 8) * 8)    # second TensorCore has work
    tm = min(tm, ((N + 7) // 8) * 8)                 # don't exceed the batch
    return max(8, tm)


# ---------------------------------------------------------------------------
# Forward pass (expects pre-folded weights; fold once, reuse across calls).
# Accepts x as (N, Cin, 7, 7) or already flattened as (N, Cin*49).
# ---------------------------------------------------------------------------
@functools.partial(jax.jit, static_argnames=("fout",))
def ms_task_forward(x, w_comb_p, b_comb_p, fout=49):
    N = x.shape[0]
    D, FP = w_comb_p.shape

    if x.ndim == 4:
        assert x.shape[1] * x.shape[2] * x.shape[3] == D
        # single fused relayout + downcast: (N, Cin, 7, 7) -> (N, D) bf16
        x_flat = x.reshape(N, D).astype(jnp.bfloat16)
    else:
        assert x.shape[1] == D
        x_flat = x.astype(jnp.bfloat16)

    tm = _pick_tm(N, D)
    grid = (pl.cdiv(N, tm),)                          # partial last block, no pad

    cost = pl.CostEstimate(
        flops=2 * N * D * FP,
        transcendentals=N * D,
        bytes_accessed=N * D * 2 + D * FP * 2 + N * FP * 4,
    )

    out_p = pl.pallas_call(
        _fused_kernel,
        out_shape=jax.ShapeDtypeStruct((N, FP), jnp.float32),
        grid=grid,
        in_specs=[
            pl.BlockSpec((tm, D), lambda i: (i, 0)),
            pl.BlockSpec((D, FP), lambda i: (0, 0)),
            pl.BlockSpec((1, FP), lambda i: (0, 0)),
        ],
        out_specs=pl.BlockSpec((tm, FP), lambda i: (i, 0)),
        compiler_params=pltpu.CompilerParams(
            dimension_semantics=("parallel",),
            vmem_limit_bytes=32 * 1024 * 1024),
        cost_estimate=cost,
    )(x_flat, w_comb_p, b_comb_p)                     # (N, 128)

    return out_p[:, :fout]


# ---------------------------------------------------------------------------
# Pure-JAX reference (mirrors the PyTorch module exactly, two-stage, f32)
# ---------------------------------------------------------------------------
def ms_task_reference(x_nchw, conv_w, conv_b, fc_w, fc_b):
    N, Cin, H, W = x_nchw.shape
    xs = jax.nn.sigmoid(x_nchw.astype(jnp.float32))
    y = jnp.einsum('nchw,oc->nohw', xs, conv_w.reshape(conv_w.shape[0], Cin))
    y = y + conv_b[None, :, None, None]
    y = y.reshape(N, -1)                              # flatten(1): (C, H, W) order
    return y @ fc_w.T + fc_b


# ---------------------------------------------------------------------------
# Deterministic parameter init (PyTorch-style uniform bounds, synthetic)
# ---------------------------------------------------------------------------
def init_params(key, input_ch):
    k1, k2, k3, k4 = jax.random.split(key, 4)
    cb = 1.0 / math.sqrt(input_ch)
    conv_w = jax.random.uniform(k1, (100, input_ch, 1, 1), jnp.float32, -cb, cb)
    conv_b = jax.random.uniform(k2, (100,), jnp.float32, -cb, cb)
    fb = 1.0 / math.sqrt(7 * 7 * 100)
    fc_w = jax.random.uniform(k3, (49, 7 * 7 * 100), jnp.float32, -fb, fb)
    fc_b = jax.random.uniform(k4, (49,), jnp.float32, -fb, fb)
    return conv_w, conv_b, fc_w, fc_b


if __name__ == "__main__":
    key = jax.random.PRNGKey(0)
    kx, kp = jax.random.split(key)

    N, Cin, H, W = 4, 32, 7, 7          # 7x7 spatial required by fc; small channels
    x = jax.random.normal(kx, (N, Cin, H, W), jnp.float32)
    conv_w, conv_b, fc_w, fc_b = init_params(kp, Cin)

    # Fold once (out of the per-call path), then run the fused kernel.
    w_comb_p, b_comb_p = fold_ms_task_params(conv_w, conv_b, fc_w, fc_b)
    out = ms_task_forward(x, w_comb_p, b_comb_p, fout=49)
    out = jax.block_until_ready(out)

    ref = ms_task_reference(x, conv_w, conv_b, fc_w, fc_b)
    assert out.shape == (N, 49), out.shape
    # bf16 input/weight streaming changes numerics slightly vs the f32 reference
    assert jnp.allclose(out, ref, atol=2e-2, rtol=2e-2), \
        float(jnp.max(jnp.abs(out - ref)))

    print("KERNEL_OK")
</pallas_src>

<mosaic_0001>
module attributes {stable_mosaic.version = 11 : i64} {
  func.func @_fused_kernel(%arg0: i32, %arg1: memref<8x1568xbf16, #tpu.memory_space<vmem>>, %arg2: memref<1568x128xbf16, #tpu.memory_space<vmem>>, %arg3: memref<1x128xf32, #tpu.memory_space<vmem>>, %arg4: memref<8x128xf32, #tpu.memory_space<vmem>>) attributes {dimension_semantics = [#tpu.dimension_semantics<parallel>], iteration_bounds = array<i64: 1>, scalar_prefetch = 0 : i64, scratch_operands = 0 : i64, tpu.core_type = #tpu.core_type<tc>, window_params = [{transform_indices = @transform_0, window_bounds = array<i64: 8, 1568>}, {pipeline_mode = #tpu.pipeline_mode<synchronous>, transform_indices = @transform_1, window_bounds = array<i64: 1568, 128>}, {pipeline_mode = #tpu.pipeline_mode<synchronous>, transform_indices = @transform_2, window_bounds = array<i64: 1, 128>}, {transform_indices = @transform_3, window_bounds = array<i64: 8, 128>}]} {
    %cst = arith.constant 0.000000e+00 : f32
    %0 = vector.broadcast %cst : f32 to vector<8x128xf32>
    %c0 = arith.constant 0 : index
    %c0_0 = arith.constant 0 : index
    %1 = vector.load %arg1[%c0, %c0_0] : memref<8x1568xbf16, #tpu.memory_space<vmem>>, vector<8x512xbf16>
    %2 = arith.extf %1 : vector<8x512xbf16> to vector<8x512xf32>
    %cst_1 = arith.constant 5.000000e-01 : f32
    %3 = vector.broadcast %cst_1 : f32 to vector<8x512xf32>
    %4 = arith.mulf %3, %2 : vector<8x512xf32>
    %5 = math.tanh %4 : vector<8x512xf32>
    %cst_2 = arith.constant 1.000000e+00 : f32
    %6 = vector.broadcast %cst_2 : f32 to vector<8x512xf32>
    %7 = arith.addf %5, %6 : vector<8x512xf32>
    %cst_3 = arith.constant 5.000000e-01 : f32
    %8 = vector.broadcast %cst_3 : f32 to vector<8x512xf32>
    %9 = arith.mulf %8, %7 : vector<8x512xf32>
    %10 = arith.truncf %9 : vector<8x512xf32> to vector<8x512xbf16>
    %c0_4 = arith.constant 0 : index
    %c0_5 = arith.constant 0 : index
    %11 = vector.load %arg2[%c0_4, %c0_5] : memref<1568x128xbf16, #tpu.memory_space<vmem>>, vector<512x128xbf16>
    %cst_6 = arith.constant dense<0.000000e+00> : vector<8x128xf32>
    %12 = tpu.matmul %10, %11, %cst_6 {dimension_numbers = #tpu.dot_dimension_numbers<[1], [0], [0], [1], [0, 0, 1, 1], [], []>} : vector<8x512xbf16>, vector<512x128xbf16>, vector<8x128xf32> -> vector<8x128xf32>
    %13 = arith.addf %0, %12 : vector<8x128xf32>
    %c0_7 = arith.constant 0 : index
    %c512 = arith.constant 512 : index
    %14 = vector.load %arg1[%c0_7, %c512] : memref<8x1568xbf16, #tpu.memory_space<vmem>>, vector<8x512xbf16>
    %15 = arith.extf %14 : vector<8x512xbf16> to vector<8x512xf32>
    %cst_8 = arith.constant 5.000000e-01 : f32
    %16 = vector.broadcast %cst_8 : f32 to vector<8x512xf32>
    %17 = arith.mulf %16, %15 : vector<8x512xf32>
    %18 = math.tanh %17 : vector<8x512xf32>
    %cst_9 = arith.constant 1.000000e+00 : f32
    %19 = vector.broadcast %cst_9 : f32 to vector<8x512xf32>
    %20 = arith.addf %18, %19 : vector<8x512xf32>
    %cst_10 = arith.constant 5.000000e-01 : f32
    %21 = vector.broadcast %cst_10 : f32 to vector<8x512xf32>
    %22 = arith.mulf %21, %20 : vector<8x512xf32>
    %23 = arith.truncf %22 : vector<8x512xf32> to vector<8x512xbf16>
    %c512_11 = arith.constant 512 : index
    %c0_12 = arith.constant 0 : index
    %24 = vector.load %arg2[%c512_11, %c0_12] : memref<1568x128xbf16, #tpu.memory_space<vmem>>, vector<512x128xbf16>
    %cst_13 = arith.constant dense<0.000000e+00> : vector<8x128xf32>
    %25 = tpu.matmul %23, %24, %cst_13 {dimension_numbers = #tpu.dot_dimension_numbers<[1], [0], [0], [1], [0, 0, 1, 1], [], []>} : vector<8x512xbf16>, vector<512x128xbf16>, vector<8x128xf32> -> vector<8x128xf32>
    %26 = arith.addf %13, %25 : vector<8x128xf32>
    %c0_14 = arith.constant 0 : index
    %c1024 = arith.constant 1024 : index
    %27 = vector.load %arg1[%c0_14, %c1024] : memref<8x1568xbf16, #tpu.memory_space<vmem>>, vector<8x512xbf16>
    %28 = arith.extf %27 : vector<8x512xbf16> to vector<8x512xf32>
    %cst_15 = arith.constant 5.000000e-01 : f32
    %29 = vector.broadcast %cst_15 : f32 to vector<8x512xf32>
    %30 = arith.mulf %29, %28 : vector<8x512xf32>
    %31 = math.tanh %30 : vector<8x512xf32>
    %cst_16 = arith.constant 1.000000e+00 : f32
    %32 = vector.broadcast %cst_16 : f32 to vector<8x512xf32>
    %33 = arith.addf %31, %32 : vector<8x512xf32>
    %cst_17 = arith.constant 5.000000e-01 : f32
    %34 = vector.broadcast %cst_17 : f32 to vector<8x512xf32>
    %35 = arith.mulf %34, %33 : vector<8x512xf32>
    %36 = arith.truncf %35 : vector<8x512xf32> to vector<8x512xbf16>
    %c1024_18 = arith.constant 1024 : index
    %c0_19 = arith.constant 0 : index
    %37 = vector.load %arg2[%c1024_18, %c0_19] : memref<1568x128xbf16, #tpu.memory_space<vmem>>, vector<512x128xbf16>
    %cst_20 = arith.constant dense<0.000000e+00> : vector<8x128xf32>
    %38 = tpu.matmul %36, %37, %cst_20 {dimension_numbers = #tpu.dot_dimension_numbers<[1], [0], [0], [1], [0, 0, 1, 1], [], []>} : vector<8x512xbf16>, vector<512x128xbf16>, vector<8x128xf32> -> vector<8x128xf32>
    %39 = arith.addf %26, %38 : vector<8x128xf32>
    %c0_21 = arith.constant 0 : index
    %c1536 = arith.constant 1536 : index
    %40 = vector.load %arg1[%c0_21, %c1536] : memref<8x1568xbf16, #tpu.memory_space<vmem>>, vector<8x32xbf16>
    %41 = arith.extf %40 : vector<8x32xbf16> to vector<8x32xf32>
    %cst_22 = arith.constant 5.000000e-01 : f32
    %42 = vector.broadcast %cst_22 : f32 to vector<8x32xf32>
    %43 = arith.mulf %42, %41 : vector<8x32xf32>
    %44 = math.tanh %43 : vector<8x32xf32>
    %cst_23 = arith.constant 1.000000e+00 : f32
    %45 = vector.broadcast %cst_23 : f32 to vector<8x32xf32>
    %46 = arith.addf %44, %45 : vector<8x32xf32>
    %cst_24 = arith.constant 5.000000e-01 : f32
    %47 = vector.broadcast %cst_24 : f32 to vector<8x32xf32>
    %48 = arith.mulf %47, %46 : vector<8x32xf32>
    %49 = arith.truncf %48 : vector<8x32xf32> to vector<8x32xbf16>
    %c1536_25 = arith.constant 1536 : index
    %c0_26 = arith.constant 0 : index
    %50 = vector.load %arg2[%c1536_25, %c0_26] : memref<1568x128xbf16, #tpu.memory_space<vmem>>, vector<32x128xbf16>
    %cst_27 = arith.constant dense<0.000000e+00> : vector<8x128xf32>
    %51 = tpu.matmul %49, %50, %cst_27 {dimension_numbers = #tpu.dot_dimension_numbers<[1], [0], [0], [1], [0, 0, 1, 1], [], []>} : vector<8x32xbf16>, vector<32x128xbf16>, vector<8x128xf32> -> vector<8x128xf32>
    %52 = arith.addf %39, %51 : vector<8x128xf32>
    %c0_28 = arith.constant 0 : index
    %c0_29 = arith.constant 0 : index
    %53 = vector.load %arg3[%c0_28, %c0_29] : memref<1x128xf32, #tpu.memory_space<vmem>>, vector<1x128xf32>
    %54 = vector.broadcast %53 : vector<1x128xf32> to vector<8x128xf32>
    %55 = arith.addf %52, %54 : vector<8x128xf32>
    %c0_30 = arith.constant 0 : index
    %c0_31 = arith.constant 0 : index
    %56 = vector.load %arg4[%c0_30, %c0_31] : memref<8x128xf32, #tpu.memory_space<vmem>>, vector<8x128xf32>
    tpu.vector_store %arg4[%c0_30, %c0_31], %55 {strides = array<i32>} : memref<8x128xf32, #tpu.memory_space<vmem>>, vector<8x128xf32>,
    return
  }
  func.func @transform_0(%arg0: i32) -> (i32, i32) {
    %c0_i32 = arith.constant 0 : i32
    %c0_i32_0 = arith.constant 0 : i32
    return %arg0, %c0_i32 : i32, i32
  }
  func.func @transform_1(%arg0: i32) -> (i32, i32) {
    %c0_i32 = arith.constant 0 : i32
    %c0_i32_0 = arith.constant 0 : i32
    %c0_i32_1 = arith.constant 0 : i32
    return %c0_i32, %c0_i32_0 : i32, i32
  }
  func.func @transform_2(%arg0: i32) -> (i32, i32) {
    %c0_i32 = arith.constant 0 : i32
    %c0_i32_0 = arith.constant 0 : i32
    %c0_i32_1 = arith.constant 0 : i32
    return %c0_i32, %c0_i32_0 : i32, i32
  }
  func.func @transform_3(%arg0: i32) -> (i32, i32) {
    %c0_i32 = arith.constant 0 : i32
    %c0_i32_0 = arith.constant 0 : i32
    return %arg0, %c0_i32 : i32, i32
  }
}

</mosaic_0001>

<llo_original>
// kernel: ms_task_forward.1
$region0: #{ms_task_forward.1}
  #allocation0 [shape = 'u32[]', space=smem, size = 0x4, offset = 0x4, fixed_abs, tag = 'smem constant byte address 0x4 - core index']
  #allocation1 [shape = 'u32[144,128]{1,0:T(1,128)}', space=vmem, size = 0x12000, scoped, tag = 'internal scratch']
  %s0 = inlined_call_operand.vmem [shape: bf16[4,1568], index: 0, kind: input, shape index: {}]
  %s1 = inlined_call_operand.vmem [shape: bf16[1568,128], index: 1, kind: input, shape index: {}]
  %s2 = inlined_call_operand.vmem [shape: f32[1,128], index: 2, kind: input, shape index: {}]
  %s3 = inlined_call_operand.hbm [shape: f32[4,128], index: 3, kind: output, shape index: {}]
  %s4 = sld [smem:[#allocation0]]
  $region22: #{ms_task_forward.1} parent=0
    _
  %s6 = ssub.s32 1, %s4
  %s7 = scalar_select 0, %s6, %s4
  $region1: #{ms_task_forward.1} parent=0
    #allocation2 [shape = 'u8[4096]{0}', space=vmem, size = 0x1000, scoped, tag = 'output window, operand 0, single buffered']
    #allocation3 [shape = 's32[1]{0}', space=sflag, size = 0x4, scoped, tag = 'scoped memory for ms_task_forward.1']
    %8 = vsyncpa [#allocation3], 0
    // Predicated region
    $region2: #{ms_task_forward.1} parent=1 // pred_check
      _
    $region3: #{ms_task_forward.1} parent=1 // pred_check_branch
      %10 = sbr.rel (0) target = $region5
    $region4: #{ms_task_forward.1} parent=1 // pred_region
      _
    $region5: #{ms_task_forward.1} parent=1 // pred_fallthru
      _
    // Predicated region
    $region6: #{ms_task_forward.1} parent=1 // pred_check
      _
    $region7: #{ms_task_forward.1} parent=1 // pred_check_branch
      %12 = sbr.rel (0) target = $region9
    $region8: #{ms_task_forward.1} parent=1 // pred_region
      _
    $region9: #{ms_task_forward.1} parent=1 // pred_fallthru
      _
    // Predicated region
    $region10: #{ms_task_forward.1} parent=1 // pred_check
      _
    $region11: #{ms_task_forward.1} parent=1 // pred_check_branch
      %14 = sbr.rel (0) target = $region13
    $region12: #{ms_task_forward.1} parent=1 // pred_region
      _
    $region13: #{ms_task_forward.1} parent=1 // pred_fallthru
      _
    %v16 = vld [vmem:[%s0] sm:$0xff]
    %v17 = vld [vmem:[%s0 + $0x1a] sm:$0xff]
    %v18 = vunpack.c.l.bf16 %v16
    %v19 = vunpack.c.h.bf16 %v16
    %v20 = vunpack.c.l.bf16 %v17
    %v21 = vunpack.c.h.bf16 %v17
    %v22 = vmul.f32 %v18, 0.5
    %v23 = vmul.f32 %v19, 0.5
    %v24 = vmul.f32 %v20, 0.5
    %v25 = vmul.f32 %v21, 0.5
    %v26 = vtanh.pop %v22
    %v27 = vtanh.pop %v23
    %v28 = vtanh.pop %v24
    %v29 = vtanh.pop %v25
    %v30 = vadd.f32 %v26, 1.0
    %v31 = vadd.f32 %v27, 1.0
    %v32 = vadd.f32 %v28, 1.0
    %v33 = vadd.f32 %v29, 1.0
    %v34 = vmul.f32 %v30, 0.5
    %v35 = vmul.f32 %v31, 0.5
    %v36 = vmul.f32 %v32, 0.5
    %v37 = vmul.f32 %v33, 0.5
    %v42 = vcombine.low %v34, %v36
    %v43 = vcombine.high %v34, %v36
    %v44 = vcombine.low %v35, %v37
    %v45 = vcombine.high %v35, %v37
    %v50 = vpack.c.bf16 %v42, %v42
    %v51 = vpack.c.bf16 %v43, %v43
    %v52 = vpack.c.bf16 %v44, %v44
    %v53 = vpack.c.bf16 %v45, %v45
    %v54 = vld [vmem:[%s1] sm:$0xf]
    %v55 = vld [vmem:[%s1 + $0x4] sm:$0xf]
    %v56 = vld [vmem:[%s1 + $0x8] sm:$0xf]
    %v57 = vld [vmem:[%s1 + $0xc] sm:$0xf]
    %v58 = vld [vmem:[%s1 + $0x10] sm:$0xf]
    %v59 = vld [vmem:[%s1 + $0x14] sm:$0xf]
    %v60 = vld [vmem:[%s1 + $0x18] sm:$0xf]
    %v61 = vld [vmem:[%s1 + $0x1c] sm:$0xf]
    %v62 = vld [vmem:[%s1 + $0x20] sm:$0xf]
    %v63 = vld [vmem:[%s1 + $0x24] sm:$0xf]
    %v64 = vld [vmem:[%s1 + $0x28] sm:$0xf]
    %v65 = vld [vmem:[%s1 + $0x2c] sm:$0xf]
    %v66 = vld [vmem:[%s1 + $0x30] sm:$0xf]
    %v67 = vld [vmem:[%s1 + $0x34] sm:$0xf]
    %v68 = vld [vmem:[%s1 + $0x38] sm:$0xf]
    %v69 = vld [vmem:[%s1 + $0x3c] sm:$0xf]
    %v70 = vld [vmem:[%s1 + $0x40] sm:$0xf]
    %v71 = vld [vmem:[%s1 + $0x44] sm:$0xf]
    %v72 = vld [vmem:[%s1 + $0x48] sm:$0xf]
    %v73 = vld [vmem:[%s1 + $0x4c] sm:$0xf]
    %v74 = vld [vmem:[%s1 + $0x50] sm:$0xf]
    %v75 = vld [vmem:[%s1 + $0x54] sm:$0xf]
    %v76 = vld [vmem:[%s1 + $0x58] sm:$0xf]
    %v77 = vld [vmem:[%s1 + $0x5c] sm:$0xf]
    %v78 = vld [vmem:[%s1 + $0x60] sm:$0xf]
    %v79 = vld [vmem:[%s1 + $0x64] sm:$0xf]
    %v80 = vld [vmem:[%s1 + $0x68] sm:$0xf]
    %v81 = vld [vmem:[%s1 + $0x6c] sm:$0xf]
    %v82 = vld [vmem:[%s1 + $0x70] sm:$0xf]
    %v83 = vld [vmem:[%s1 + $0x74] sm:$0xf]
    %v84 = vld [vmem:[%s1 + $0x78] sm:$0xf]
    %v85 = vld [vmem:[%s1 + $0x7c] sm:$0xf]
    %v86 = vld [vmem:[%s1 + $0x80] sm:$0xf]
    %v87 = vld [vmem:[%s1 + $0x84] sm:$0xf]
    %v88 = vld [vmem:[%s1 + $0x88] sm:$0xf]
    %v89 = vld [vmem:[%s1 + $0x8c] sm:$0xf]
    %v90 = vld [vmem:[%s1 + $0x90] sm:$0xf]
    %v91 = vld [vmem:[%s1 + $0x94] sm:$0xf]
    %v92 = vld [vmem:[%s1 + $0x98] sm:$0xf]
    %v93 = vld [vmem:[%s1 + $0x9c] sm:$0xf]
    %v94 = vld [vmem:[%s1 + $0xa0] sm:$0xf]
    %v95 = vld [vmem:[%s1 + $0xa4] sm:$0xf]
    %v96 = vld [vmem:[%s1 + $0xa8] sm:$0xf]
    %v97 = vld [vmem:[%s1 + $0xac] sm:$0xf]
    %v98 = vld [vmem:[%s1 + $0xb0] sm:$0xf]
    %v99 = vld [vmem:[%s1 + $0xb4] sm:$0xf]
    %v100 = vld [vmem:[%s1 + $0xb8] sm:$0xf]
    %v101 = vld [vmem:[%s1 + $0xbc] sm:$0xf]
    %v102 = vld [vmem:[%s1 + $0xc0] sm:$0xf]
    %v103 = vld [vmem:[%s1 + $0xc4] sm:$0xf]
    %v104 = vld [vmem:[%s1 + $0xc8] sm:$0xf]
    %v105 = vld [vmem:[%s1 + $0xcc] sm:$0xf]
    %v106 = vld [vmem:[%s1 + $0xd0] sm:$0xf]
    %v107 = vld [vmem:[%s1 + $0xd4] sm:$0xf]
    %v108 = vld [vmem:[%s1 + $0xd8] sm:$0xf]
    %v109 = vld [vmem:[%s1 + $0xdc] sm:$0xf]
    %v110 = vld [vmem:[%s1 + $0xe0] sm:$0xf]
    %v111 = vld [vmem:[%s1 + $0xe4] sm:$0xf]
    %v112 = vld [vmem:[%s1 + $0xe8] sm:$0xf]
    %v113 = vld [vmem:[%s1 + $0xec] sm:$0xf]
    %v114 = vld [vmem:[%s1 + $0xf0] sm:$0xf]
    %v115 = vld [vmem:[%s1 + $0xf4] sm:$0xf]
    %v116 = vld [vmem:[%s1 + $0xf8] sm:$0xf]
    %v117 = vld [vmem:[%s1 + $0xfc] sm:$0xf]
    %v118 = vld [vmem:[%s0 + $0x8] sm:$0xff]
    %v119 = vld [vmem:[%s0 + $0x22] sm:$0xff]
    %v120 = vunpack.c.l.bf16 %v118
    %v121 = vunpack.c.h.bf16 %v118
    %v122 = vunpack.c.l.bf16 %v119
    %v123 = vunpack.c.h.bf16 %v119
    %v124 = vmul.f32 %v120, 0.5
    %v125 = vmul.f32 %v121, 0.5
    %v126 = vmul.f32 %v122, 0.5
    %v127 = vmul.f32 %v123, 0.5
    %v128 = vtanh.pop %v124
    %v129 = vtanh.pop %v125
    %v130 = vtanh.pop %v126
    %v131 = vtanh.pop %v127
    %v132 = vadd.f32 %v128, 1.0
    %v133 = vadd.f32 %v129, 1.0
    %v134 = vadd.f32 %v130, 1.0
    %v135 = vadd.f32 %v131, 1.0
    %v136 = vmul.f32 %v132, 0.5
    %v137 = vmul.f32 %v133, 0.5
    %v138 = vmul.f32 %v134, 0.5
    %v139 = vmul.f32 %v135, 0.5
    %v144 = vcombine.low %v136, %v138
    %v145 = vcombine.high %v136, %v138
    %v146 = vcombine.low %v137, %v139
    %v147 = vcombine.high %v137, %v139
    %v152 = vpack.c.bf16 %v144, %v144
    %v153 = vpack.c.bf16 %v145, %v145
    %v154 = vpack.c.bf16 %v146, %v146
    %v155 = vpack.c.bf16 %v147, %v147
    %v156 = vld [vmem:[%s1 + $0x100] sm:$0xf]
    %v157 = vld [vmem:[%s1 + $0x104] sm:$0xf]
    %v158 = vld [vmem:[%s1 + $0x108] sm:$0xf]
    %v159 = vld [vmem:[%s1 + $0x10c] sm:$0xf]
    %v160 = vld [vmem:[%s1 + $0x110] sm:$0xf]
    %v161 = vld [vmem:[%s1 + $0x114] sm:$0xf]
    %v162 = vld [vmem:[%s1 + $0x118] sm:$0xf]
    %v163 = vld [vmem:[%s1 + $0x11c] sm:$0xf]
    %v164 = vld [vmem:[%s1 + $0x120] sm:$0xf]
    %v165 = vld [vmem:[%s1 + $0x124] sm:$0xf]
    %v166 = vld [vmem:[%s1 + $0x128] sm:$0xf]
    %v167 = vld [vmem:[%s1 + $0x12c] sm:$0xf]
    %v168 = vld [vmem:[%s1 + $0x130] sm:$0xf]
    %v169 = vld [vmem:[%s1 + $0x134] sm:$0xf]
    %v170 = vld [vmem:[%s1 + $0x138] sm:$0xf]
    %v171 = vld [vmem:[%s1 + $0x13c] sm:$0xf]
    %v172 = vld [vmem:[%s1 + $0x140] sm:$0xf]
    %v173 = vld [vmem:[%s1 + $0x144] sm:$0xf]
    %v174 = vld [vmem:[%s1 + $0x148] sm:$0xf]
    %v175 = vld [vmem:[%s1 + $0x14c] sm:$0xf]
    %v176 = vld [vmem:[%s1 + $0x150] sm:$0xf]
    %v177 = vld [vmem:[%s1 + $0x154] sm:$0xf]
    %v178 = vld [vmem:[%s1 + $0x158] sm:$0xf]
    %v179 = vld [vmem:[%s1 + $0x15c] sm:$0xf]
    %v180 = vld [vmem:[%s1 + $0x160] sm:$0xf]
    %v181 = vld [vmem:[%s1 + $0x164] sm:$0xf]
    %v182 = vld [vmem:[%s1 + $0x168] sm:$0xf]
    %v183 = vld [vmem:[%s1 + $0x16c] sm:$0xf]
    %v184 = vld [vmem:[%s1 + $0x170] sm:$0xf]
    %v185 = vld [vmem:[%s1 + $0x174] sm:$0xf]
    %v186 = vld [vmem:[%s1 + $0x178] sm:$0xf]
    %v187 = vld [vmem:[%s1 + $0x17c] sm:$0xf]
    %v188 = vld [vmem:[%s1 + $0x180] sm:$0xf]
    %v189 = vld [vmem:[%s1 + $0x184] sm:$0xf]
    %v190 = vld [vmem:[%s1 + $0x188] sm:$0xf]
    %v191 = vld [vmem:[%s1 + $0x18c] sm:$0xf]
    %v192 = vld [vmem:[%s1 + $0x190] sm:$0xf]
    %v193 = vld [vmem:[%s1 + $0x194] sm:$0xf]
    %v194 = vld [vmem:[%s1 + $0x198] sm:$0xf]
    %v195 = vld [vmem:[%s1 + $0x19c] sm:$0xf]
    %v196 = vld [vmem:[%s1 + $0x1a0] sm:$0xf]
    %v197 = vld [vmem:[%s1 + $0x1a4] sm:$0xf]
    %v198 = vld [vmem:[%s1 + $0x1a8] sm:$0xf]
    %v199 = vld [vmem:[%s1 + $0x1ac] sm:$0xf]
    %v200 = vld [vmem:[%s1 + $0x1b0] sm:$0xf]
    %v201 = vld [vmem:[%s1 + $0x1b4] sm:$0xf]
    %v202 = vld [vmem:[%s1 + $0x1b8] sm:$0xf]
    %v203 = vld [vmem:[%s1 + $0x1bc] sm:$0xf]
    %v204 = vld [vmem:[%s1 + $0x1c0] sm:$0xf]
    %v205 = vld [vmem:[%s1 + $0x1c4] sm:$0xf]
    %v206 = vld [vmem:[%s1 + $0x1c8] sm:$0xf]
    %v207 = vld [vmem:[%s1 + $0x1cc] sm:$0xf]
    %v208 = vld [vmem:[%s1 + $0x1d0] sm:$0xf]
    %v209 = vld [vmem:[%s1 + $0x1d4] sm:$0xf]
    %v210 = vld [vmem:[%s1 + $0x1d8] sm:$0xf]
    %v211 = vld [vmem:[%s1 + $0x1dc] sm:$0xf]
    %v212 = vld [vmem:[%s1 + $0x1e0] sm:$0xf]
    %v213 = vld [vmem:[%s1 + $0x1e4] sm:$0xf]
    %v214 = vld [vmem:[%s1 + $0x1e8] sm:$0xf]
    %v215 = vld [vmem:[%s1 + $0x1ec] sm:$0xf]
    %v216 = vld [vmem:[%s1 + $0x1f0] sm:$0xf]
    %v217 = vld [vmem:[%s1 + $0x1f4] sm:$0xf]
    %v218 = vld [vmem:[%s1 + $0x1f8] sm:$0xf]
    %v219 = vld [vmem:[%s1 + $0x1fc] sm:$0xf]
    %v284 = vunpack.c.l.b16 %v156
    %v285 = vunpack.c.l.b16 %v157
    %v286 = vunpack.c.l.b16 %v158
    %v287 = vunpack.c.l.b16 %v159
    %v288 = vunpack.c.l.b16 %v160
    %v289 = vunpack.c.l.b16 %v161
    %v290 = vunpack.c.l.b16 %v162
    %v291 = vunpack.c.l.b16 %v163
    %v292 = vunpack.c.l.b16 %v164
    %v293 = vunpack.c.l.b16 %v165
    %v294 = vunpack.c.l.b16 %v166
    %v295 = vunpack.c.l.b16 %v167
    %v296 = vunpack.c.l.b16 %v168
    %v297 = vunpack.c.l.b16 %v169
    %v298 = vunpack.c.l.b16 %v170
    %v299 = vunpack.c.l.b16 %v171
    %v300 = vunpack.c.l.b16 %v172
    %v301 = vunpack.c.l.b16 %v173
    %v302 = vunpack.c.l.b16 %v174
    %v303 = vunpack.c.l.b16 %v175
    %v304 = vunpack.c.l.b16 %v176
    %v305 = vunpack.c.l.b16 %v177
    %v306 = vunpack.c.l.b16 %v178
    %v307 = vunpack.c.l.b16 %v179
    %v308 = vunpack.c.l.b16 %v180
    %v309 = vunpack.c.l.b16 %v181
    %v310 = vunpack.c.l.b16 %v182
    %v311 = vunpack.c.l.b16 %v183
    %v312 = vunpack.c.l.b16 %v184
    %v313 = vunpack.c.l.b16 %v185
    %v314 = vunpack.c.l.b16 %v186
    %v315 = vunpack.c.l.b16 %v187
    %v316 = vunpack.c.l.b16 %v188
    %v317 = vunpack.c.l.b16 %v189
    %v318 = vunpack.c.l.b16 %v190
    %v319 = vunpack.c.l.b16 %v191
    %v320 = vunpack.c.l.b16 %v192
    %v321 = vunpack.c.l.b16 %v193
    %v322 = vunpack.c.l.b16 %v194
    %v323 = vunpack.c.l.b16 %v195
    %v324 = vunpack.c.l.b16 %v196
    %v325 = vunpack.c.l.b16 %v197
    %v326 = vunpack.c.l.b16 %v198
    %v327 = vunpack.c.l.b16 %v199
    %v328 = vunpack.c.l.b16 %v200
    %v329 = vunpack.c.l.b16 %v201
    %v330 = vunpack.c.l.b16 %v202
    %v331 = vunpack.c.l.b16 %v203
    %v332 = vunpack.c.l.b16 %v204
    %v333 = vunpack.c.l.b16 %v205
    %v334 = vunpack.c.l.b16 %v206
    %v335 = vunpack.c.l.b16 %v207
    %v336 = vunpack.c.l.b16 %v208
    %v337 = vunpack.c.l.b16 %v209
    %v338 = vunpack.c.l.b16 %v210
    %v339 = vunpack.c.l.b16 %v211
    %v340 = vunpack.c.l.b16 %v212
    %v341 = vunpack.c.l.b16 %v213
    %v342 = vunpack.c.l.b16 %v214
    %v343 = vunpack.c.l.b16 %v215
    %v344 = vunpack.c.l.b16 %v216
    %v345 = vunpack.c.l.b16 %v217
    %v346 = vunpack.c.l.b16 %v218
    %v347 = vunpack.c.l.b16 %v219
    %v348 = vpack.c.b16 %v285, %v284
    %v349 = vpack.c.b16 %v287, %v286
    %v350 = vpack.c.b16 %v289, %v288
    %v351 = vpack.c.b16 %v291, %v290
    %v352 = vpack.c.b16 %v293, %v292
    %v353 = vpack.c.b16 %v295, %v294
    %v354 = vpack.c.b16 %v297, %v296
    %v355 = vpack.c.b16 %v299, %v298
    %v356 = vpack.c.b16 %v301, %v300
    %v357 = vpack.c.b16 %v303, %v302
    %v358 = vpack.c.b16 %v305, %v304
    %v359 = vpack.c.b16 %v307, %v306
    %v360 = vpack.c.b16 %v309, %v308
    %v361 = vpack.c.b16 %v311, %v310
    %v362 = vpack.c.b16 %v313, %v312
    %v363 = vpack.c.b16 %v315, %v314
    %v364 = vpack.c.b16 %v317, %v316
    %v365 = vpack.c.b16 %v319, %v318
    %v366 = vpack.c.b16 %v321, %v320
    %v367 = vpack.c.b16 %v323, %v322
    %v368 = vpack.c.b16 %v325, %v324
    %v369 = vpack.c.b16 %v327, %v326
    %v370 = vpack.c.b16 %v329, %v328
    %v371 = vpack.c.b16 %v331, %v330
    %v372 = vpack.c.b16 %v333, %v332
    %v373 = vpack.c.b16 %v335, %v334
    %v374 = vpack.c.b16 %v337, %v336
    %v375 = vpack.c.b16 %v339, %v338
    %v376 = vpack.c.b16 %v341, %v340
    %v377 = vpack.c.b16 %v343, %v342
    %v378 = vpack.c.b16 %v345, %v344
    %v379 = vpack.c.b16 %v347, %v346
    %412 = vmatprep.subr.bf16.mxu0 0
    %413 = vmatpush1.bf16.msra.mxu0 %v348
    %414 = vmatprep.subr.bf16.mxu0 0
    %415 = vmatpush1.bf16.msra.mxu0 %v349
    %416 = vmatprep.subr.bf16.mxu0 0
    %417 = vmatpush1.bf16.msra.mxu0 %v350
    %418 = vmatprep.subr.bf16.mxu0 0
    %419 = vmatpush1.bf16.msra.mxu0 %v351
    %420 = vmatprep.subr.bf16.mxu0 0
    %421 = vmatpush1.bf16.msra.mxu0 %v352
    %422 = vmatprep.subr.bf16.mxu0 0
    %423 = vmatpush1.bf16.msra.mxu0 %v353
    %424 = vmatprep.subr.bf16.mxu0 0
    %425 = vmatpush1.bf16.msra.mxu0 %v354
    %426 = vmatprep.subr.bf16.mxu0 0
    %427 = vmatpush1.bf16.msra.mxu0 %v355
    %428 = vmatprep.subr.bf16.mxu0 0
    %429 = vmatpush1.bf16.msra.mxu0 %v356
    %430 = vmatprep.subr.bf16.mxu0 0
    %431 = vmatpush1.bf16.msra.mxu0 %v357
    %432 = vmatprep.subr.bf16.mxu0 0
    %433 = vmatpush1.bf16.msra.mxu0 %v358
    %434 = vmatprep.subr.bf16.mxu0 0
    %435 = vmatpush1.bf16.msra.mxu0 %v359
    %436 = vmatprep.subr.bf16.mxu0 0
    %437 = vmatpush1.bf16.msra.mxu0 %v360
    %438 = vmatprep.subr.bf16.mxu0 0
    %439 = vmatpush1.bf16.msra.mxu0 %v361
    %440 = vmatprep.subr.bf16.mxu0 0
    %441 = vmatpush1.bf16.msra.mxu0 %v362
    %442 = vmatprep.subr.bf16.mxu0 0
    %443 = vmatpush1.bf16.msra.mxu0 %v363
    %444 = vmatprep.mubr.bf16.mxu0 %v153
    %445 = vmatmul.mubr.bf16.gmra.mrb[0].mxu0 %v152
    %v446 = vpop.f32.mrb[0].mxu0
    %v447 = vadd.f32 0.0, %v446
    %v448 = vpop.f32.mrb[0].mxu0
    %v449 = vpop.f32.mrb[0].mxu0
    %v450 = vpop.f32.mrb[0].mxu0
    %451 = vdwg.mxu0
    %452 = vmatprep.subr.bf16.mxu0 0
    %453 = vmatpush1.bf16.msra.mxu0 %v364
    %454 = vmatprep.subr.bf16.mxu0 0
    %455 = vmatpush1.bf16.msra.mxu0 %v365
    %456 = vmatprep.subr.bf16.mxu0 0
    %457 = vmatpush1.bf16.msra.mxu0 %v366
    %458 = vmatprep.subr.bf16.mxu0 0
    %459 = vmatpush1.bf16.msra.mxu0 %v367
    %460 = vmatprep.subr.bf16.mxu0 0
    %461 = vmatpush1.bf16.msra.mxu0 %v368
    %462 = vmatprep.subr.bf16.mxu0 0
    %463 = vmatpush1.bf16.msra.mxu0 %v369
    %464 = vmatprep.subr.bf16.mxu0 0
    %465 = vmatpush1.bf16.msra.mxu0 %v370
    %466 = vmatprep.subr.bf16.mxu0 0
    %467 = vmatpush1.bf16.msra.mxu0 %v371
    %468 = vmatprep.subr.bf16.mxu0 0
    %469 = vmatpush1.bf16.msra.mxu0 %v372
    %470 = vmatprep.subr.bf16.mxu0 0
    %471 = vmatpush1.bf16.msra.mxu0 %v373
    %472 = vmatprep.subr.bf16.mxu0 0
    %473 = vmatpush1.bf16.msra.mxu0 %v374
    %474 = vmatprep.subr.bf16.mxu0 0
    %475 = vmatpush1.bf16.msra.mxu0 %v375
    %476 = vmatprep.subr.bf16.mxu0 0
    %477 = vmatpush1.bf16.msra.mxu0 %v376
    %478 = vmatprep.subr.bf16.mxu0 0
    %479 = vmatpush1.bf16.msra.mxu0 %v377
    %480 = vmatprep.subr.bf16.mxu0 0
    %481 = vmatpush1.bf16.msra.mxu0 %v378
    %482 = vmatprep.subr.bf16.mxu0 0
    %483 = vmatpush1.bf16.msra.mxu0 %v379
    %484 = vmatprep.mubr.bf16.mxu0 %v155
    %485 = vmatmul.mubr.bf16.gmra.mrb[0].mxu0 %v154
    %v486 = vpop.f32.mrb[0].mxu0
    %v487 = vadd.f32 %v447, %v486
    %v488 = vpop.f32.mrb[0].mxu0
    %v489 = vpop.f32.mrb[0].mxu0
    %v490 = vpop.f32.mrb[0].mxu0
    %491 = vdwg.mxu0
    %v556 = vunpack.c.l.b16 %v54
    %v557 = vunpack.c.l.b16 %v55
    %v558 = vunpack.c.l.b16 %v56
    %v559 = vunpack.c.l.b16 %v57
    %v560 = vunpack.c.l.b16 %v58
    %v561 = vunpack.c.l.b16 %v59
    %v562 = vunpack.c.l.b16 %v60
    %v563 = vunpack.c.l.b16 %v61
    %v564 = vunpack.c.l.b16 %v62
    %v565 = vunpack.c.l.b16 %v63
    %v566 = vunpack.c.l.b16 %v64
    %v567 = vunpack.c.l.b16 %v65
    %v568 = vunpack.c.l.b16 %v66
    %v569 = vunpack.c.l.b16 %v67
    %v570 = vunpack.c.l.b16 %v68
    %v571 = vunpack.c.l.b16 %v69
    %v572 = vunpack.c.l.b16 %v70
    %v573 = vunpack.c.l.b16 %v71
    %v574 = vunpack.c.l.b16 %v72
    %v575 = vunpack.c.l.b16 %v73
    %v576 = vunpack.c.l.b16 %v74
    %v577 = vunpack.c.l.b16 %v75
    %v578 = vunpack.c.l.b16 %v76
    %v579 = vunpack.c.l.b16 %v77
    %v580 = vunpack.c.l.b16 %v78
    %v581 = vunpack.c.l.b16 %v79
    %v582 = vunpack.c.l.b16 %v80
    %v583 = vunpack.c.l.b16 %v81
    %v584 = vunpack.c.l.b16 %v82
    %v585 = vunpack.c.l.b16 %v83
    %v586 = vunpack.c.l.b16 %v84
    %v587 = vunpack.c.l.b16 %v85
    %v588 = vunpack.c.l.b16 %v86
    %v589 = vunpack.c.l.b16 %v87
    %v590 = vunpack.c.l.b16 %v88
    %v591 = vunpack.c.l.b16 %v89
    %v592 = vunpack.c.l.b16 %v90
    %v593 = vunpack.c.l.b16 %v91
    %v594 = vunpack.c.l.b16 %v92
    %v595 = vunpack.c.l.b16 %v93
    %v596 = vunpack.c.l.b16 %v94
    %v597 = vunpack.c.l.b16 %v95
    %v598 = vunpack.c.l.b16 %v96
    %v599 = vunpack.c.l.b16 %v97
    %v600 = vunpack.c.l.b16 %v98
    %v601 = vunpack.c.l.b16 %v99
    %v602 = vunpack.c.l.b16 %v100
    %v603 = vunpack.c.l.b16 %v101
    %v604 = vunpack.c.l.b16 %v102
    %v605 = vunpack.c.l.b16 %v103
    %v606 = vunpack.c.l.b16 %v104
    %v607 = vunpack.c.l.b16 %v105
    %v608 = vunpack.c.l.b16 %v106
    %v609 = vunpack.c.l.b16 %v107
    %v610 = vunpack.c.l.b16 %v108
    %v611 = vunpack.c.l.b16 %v109
    %v612 = vunpack.c.l.b16 %v110
    %v613 = vunpack.c.l.b16 %v111
    %v614 = vunpack.c.l.b16 %v112
    %v615 = vunpack.c.l.b16 %v113
    %v616 = vunpack.c.l.b16 %v114
    %v617 = vunpack.c.l.b16 %v115
    %v618 = vunpack.c.l.b16 %v116
    %v619 = vunpack.c.l.b16 %v117
    %v620 = vpack.c.b16 %v557, %v556
    %v621 = vpack.c.b16 %v559, %v558
    %v622 = vpack.c.b16 %v561, %v560
    %v623 = vpack.c.b16 %v563, %v562
    %v624 = vpack.c.b16 %v565, %v564
    %v625 = vpack.c.b16 %v567, %v566
    %v626 = vpack.c.b16 %v569, %v568
    %v627 = vpack.c.b16 %v571, %v570
    %v628 = vpack.c.b16 %v573, %v572
    %v629 = vpack.c.b16 %v575, %v574
    %v630 = vpack.c.b16 %v577, %v576
    %v631 = vpack.c.b16 %v579, %v578
    %v632 = vpack.c.b16 %v581, %v580
    %v633 = vpack.c.b16 %v583, %v582
    %v634 = vpack.c.b16 %v585, %v584
    %v635 = vpack.c.b16 %v587, %v586
    %v636 = vpack.c.b16 %v589, %v588
    %v637 = vpack.c.b16 %v591, %v590
    %v638 = vpack.c.b16 %v593, %v592
    %v639 = vpack.c.b16 %v595, %v594
    %v640 = vpack.c.b16 %v597, %v596
    %v641 = vpack.c.b16 %v599, %v598
    %v642 = vpack.c.b16 %v601, %v600
    %v643 = vpack.c.b16 %v603, %v602
    %v644 = vpack.c.b16 %v605, %v604
    %v645 = vpack.c.b16 %v607, %v606
    %v646 = vpack.c.b16 %v609, %v608
    %v647 = vpack.c.b16 %v611, %v610
    %v648 = vpack.c.b16 %v613, %v612
    %v649 = vpack.c.b16 %v615, %v614
    %v650 = vpack.c.b16 %v617, %v616
    %v651 = vpack.c.b16 %v619, %v618
    %684 = vmatprep.subr.bf16.mxu0 0
    %685 = vmatpush1.bf16.msra.mxu0 %v620
    %686 = vmatprep.subr.bf16.mxu0 0
    %687 = vmatpush1.bf16.msra.mxu0 %v621
    %688 = vmatprep.subr.bf16.mxu0 0
    %689 = vmatpush1.bf16.msra.mxu0 %v622
    %690 = vmatprep.subr.bf16.mxu0 0
    %691 = vmatpush1.bf16.msra.mxu0 %v623
    %692 = vmatprep.subr.bf16.mxu0 0
    %693 = vmatpush1.bf16.msra.mxu0 %v624
    %694 = vmatprep.subr.bf16.mxu0 0
    %695 = vmatpush1.bf16.msra.mxu0 %v625
    %696 = vmatprep.subr.bf16.mxu0 0
    %697 = vmatpush1.bf16.msra.mxu0 %v626
    %698 = vmatprep.subr.bf16.mxu0 0
    %699 = vmatpush1.bf16.msra.mxu0 %v627
    %700 = vmatprep.subr.bf16.mxu0 0
    %701 = vmatpush1.bf16.msra.mxu0 %v628
    %702 = vmatprep.subr.bf16.mxu0 0
    %703 = vmatpush1.bf16.msra.mxu0 %v629
    %704 = vmatprep.subr.bf16.mxu0 0
    %705 = vmatpush1.bf16.msra.mxu0 %v630
    %706 = vmatprep.subr.bf16.mxu0 0
    %707 = vmatpush1.bf16.msra.mxu0 %v631
    %708 = vmatprep.subr.bf16.mxu0 0
    %709 = vmatpush1.bf16.msra.mxu0 %v632
    %710 = vmatprep.subr.bf16.mxu0 0
    %711 = vmatpush1.bf16.msra.mxu0 %v633
    %712 = vmatprep.subr.bf16.mxu0 0
    %713 = vmatpush1.bf16.msra.mxu0 %v634
    %714 = vmatprep.subr.bf16.mxu0 0
    %715 = vmatpush1.bf16.msra.mxu0 %v635
    %716 = vmatprep.mubr.bf16.mxu0 %v51
    %717 = vmatmul.mubr.bf16.gmra.mrb[0].mxu0 %v50
    %v718 = vpop.f32.mrb[0].mxu0
    %v719 = vadd.f32 %v487, %v718
    %v720 = vpop.f32.mrb[0].mxu0
    %v721 = vpop.f32.mrb[0].mxu0
    %v722 = vpop.f32.mrb[0].mxu0
    %723 = vdwg.mxu0
    %724 = vmatprep.subr.bf16.mxu0 0
    %725 = vmatpush1.bf16.msra.mxu0 %v636
    %726 = vmatprep.subr.bf16.mxu0 0
    %727 = vmatpush1.bf16.msra.mxu0 %v637
    %728 = vmatprep.subr.bf16.mxu0 0
    %729 = vmatpush1.bf16.msra.mxu0 %v638
    %730 = vmatprep.subr.bf16.mxu0 0
    %731 = vmatpush1.bf16.msra.mxu0 %v639
    %732 = vmatprep.subr.bf16.mxu0 0
    %733 = vmatpush1.bf16.msra.mxu0 %v640
    %734 = vmatprep.subr.bf16.mxu0 0
    %735 = vmatpush1.bf16.msra.mxu0 %v641
    %736 = vmatprep.subr.bf16.mxu0 0
    %737 = vmatpush1.bf16.msra.mxu0 %v642
    %738 = vmatprep.subr.bf16.mxu0 0
    %739 = vmatpush1.bf16.msra.mxu0 %v643
    %740 = vmatprep.subr.bf16.mxu0 0
    %741 = vmatpush1.bf16.msra.mxu0 %v644
    %742 = vmatprep.subr.bf16.mxu0 0
    %743 = vmatpush1.bf16.msra.mxu0 %v645
    %744 = vmatprep.subr.bf16.mxu0 0
    %745 = vmatpush1.bf16.msra.mxu0 %v646
    %746 = vmatprep.subr.bf16.mxu0 0
    %747 = vmatpush1.bf16.msra.mxu0 %v647
    %748 = vmatprep.subr.bf16.mxu0 0
    %749 = vmatpush1.bf16.msra.mxu0 %v648
    %750 = vmatprep.subr.bf16.mxu0 0
    %751 = vmatpush1.bf16.msra.mxu0 %v649
    %752 = vmatprep.subr.bf16.mxu0 0
    %753 = vmatpush1.bf16.msra.mxu0 %v650
    %754 = vmatprep.subr.bf16.mxu0 0
    %755 = vmatpush1.bf16.msra.mxu0 %v651
    %756 = vmatprep.mubr.bf16.mxu0 %v53
    %757 = vmatmul.mubr.bf16.gmra.mrb[0].mxu0 %v52
    %v758 = vpop.f32.mrb[0].mxu0
    %v759 = vadd.f32 %v719, %v758
    %v760 = vpop.f32.mrb[0].mxu0
    %v761 = vpop.f32.mrb[0].mxu0
    %v762 = vpop.f32.mrb[0].mxu0
    %763 = vdwg.mxu0
    %v764 = vld [vmem:[%s0 + $0x10] sm:$0xff]
    %v765 = vld [vmem:[%s0 + $0x2a] sm:$0xff]
    %v766 = vunpack.c.l.bf16 %v764
    %v767 = vunpack.c.h.bf16 %v764
    %v768 = vunpack.c.l.bf16 %v765
    %v769 = vunpack.c.h.bf16 %v765
    %v770 = vmul.f32 %v766, 0.5
    %v771 = vmul.f32 %v767, 0.5
    %v772 = vmul.f32 %v768, 0.5
    %v773 = vmul.f32 %v769, 0.5
    %v774 = vtanh.pop %v770
    %v775 = vtanh.pop %v771
    %v776 = vtanh.pop %v772
    %v777 = vtanh.pop %v773
    %v778 = vadd.f32 %v774, 1.0
    %v779 = vadd.f32 %v775, 1.0
    %v780 = vadd.f32 %v776, 1.0
    %v781 = vadd.f32 %v777, 1.0
    %v782 = vmul.f32 %v778, 0.5
    %v783 = vmul.f32 %v779, 0.5
    %v784 = vmul.f32 %v780, 0.5
    %v785 = vmul.f32 %v781, 0.5
    %v790 = vcombine.low %v782, %v784
    %v791 = vcombine.high %v782, %v784
    %v792 = vcombine.low %v783, %v785
    %v793 = vcombine.high %v783, %v785
    %v798 = vpack.c.bf16 %v790, %v790
    %v799 = vpack.c.bf16 %v791, %v791
    %v800 = vpack.c.bf16 %v792, %v792
    %v801 = vpack.c.bf16 %v793, %v793
    %v802 = vld [vmem:[%s1 + $0x200] sm:$0xf]
    %v803 = vld [vmem:[%s1 + $0x204] sm:$0xf]
    %v804 = vld [vmem:[%s1 + $0x208] sm:$0xf]
    %v805 = vld [vmem:[%s1 + $0x20c] sm:$0xf]
    %v806 = vld [vmem:[%s1 + $0x210] sm:$0xf]
    %v807 = vld [vmem:[%s1 + $0x214] sm:$0xf]
    %v808 = vld [vmem:[%s1 + $0x218] sm:$0xf]
    %v809 = vld [vmem:[%s1 + $0x21c] sm:$0xf]
    %v810 = vld [vmem:[%s1 + $0x220] sm:$0xf]
    %v811 = vld [vmem:[%s1 + $0x224] sm:$0xf]
    %v812 = vld [vmem:[%s1 + $0x228] sm:$0xf]
    %v813 = vld [vmem:[%s1 + $0x22c] sm:$0xf]
    %v814 = vld [vmem:[%s1 + $0x230] sm:$0xf]
    %v815 = vld [vmem:[%s1 + $0x234] sm:$0xf]
    %v816 = vld [vmem:[%s1 + $0x238] sm:$0xf]
    %v817 = vld [vmem:[%s1 + $0x23c] sm:$0xf]
    %v818 = vld [vmem:[%s1 + $0x240] sm:$0xf]
    %v819 = vld [vmem:[%s1 + $0x244] sm:$0xf]
    %v820 = vld [vmem:[%s1 + $0x248] sm:$0xf]
    %v821 = vld [vmem:[%s1 + $0x24c] sm:$0xf]
    %v822 = vld [vmem:[%s1 + $0x250] sm:$0xf]
    %v823 = vld [vmem:[%s1 + $0x254] sm:$0xf]
    %v824 = vld [vmem:[%s1 + $0x258] sm:$0xf]
    %v825 = vld [vmem:[%s1 + $0x25c] sm:$0xf]
    %v826 = vld [vmem:[%s1 + $0x260] sm:$0xf]
    %v827 = vld [vmem:[%s1 + $0x264] sm:$0xf]
    %v828 = vld [vmem:[%s1 + $0x268] sm:$0xf]
    %v829 = vld [vmem:[%s1 + $0x26c] sm:$0xf]
    %v830 = vld [vmem:[%s1 + $0x270] sm:$0xf]
    %v831 = vld [vmem:[%s1 + $0x274] sm:$0xf]
    %v832 = vld [vmem:[%s1 + $0x278] sm:$0xf]
    %v833 = vld [vmem:[%s1 + $0x27c] sm:$0xf]
    %v834 = vld [vmem:[%s1 + $0x280] sm:$0xf]
    %v835 = vld [vmem:[%s1 + $0x284] sm:$0xf]
    %v836 = vld [vmem:[%s1 + $0x288] sm:$0xf]
    %v837 = vld [vmem:[%s1 + $0x28c] sm:$0xf]
    %v838 = vld [vmem:[%s1 + $0x290] sm:$0xf]
    %v839 = vld [vmem:[%s1 + $0x294] sm:$0xf]
    %v840 = vld [vmem:[%s1 + $0x298] sm:$0xf]
    %v841 = vld [vmem:[%s1 + $0x29c] sm:$0xf]
    %v842 = vld [vmem:[%s1 + $0x2a0] sm:$0xf]
    %v843 = vld [vmem:[%s1 + $0x2a4] sm:$0xf]
    %v844 = vld [vmem:[%s1 + $0x2a8] sm:$0xf]
    %v845 = vld [vmem:[%s1 + $0x2ac] sm:$0xf]
    %v846 = vld [vmem:[%s1 + $0x2b0] sm:$0xf]
    %v847 = vld [vmem:[%s1 + $0x2b4] sm:$0xf]
    %v848 = vld [vmem:[%s1 + $0x2b8] sm:$0xf]
    %v849 = vld [vmem:[%s1 + $0x2bc] sm:$0xf]
    %v850 = vld [vmem:[%s1 + $0x2c0] sm:$0xf]
    %v851 = vld [vmem:[%s1 + $0x2c4] sm:$0xf]
    %v852 = vld [vmem:[%s1 + $0x2c8] sm:$0xf]
    %v853 = vld [vmem:[%s1 + $0x2cc] sm:$0xf]
    %v854 = vld [vmem:[%s1 + $0x2d0] sm:$0xf]
    %v855 = vld [vmem:[%s1 + $0x2d4] sm:$0xf]
    %v856 = vld [vmem:[%s1 + $0x2d8] sm:$0xf]
    %v857 = vld [vmem:[%s1 + $0x2dc] sm:$0xf]
    %v858 = vld [vmem:[%s1 + $0x2e0] sm:$0xf]
    %v859 = vld [vmem:[%s1 + $0x2e4] sm:$0xf]
    %v860 = vld [vmem:[%s1 + $0x2e8] sm:$0xf]
    %v861 = vld [vmem:[%s1 + $0x2ec] sm:$0xf]
    %v862 = vld [vmem:[%s1 + $0x2f0] sm:$0xf]
    %v863 = vld [vmem:[%s1 + $0x2f4] sm:$0xf]
    %v864 = vld [vmem:[%s1 + $0x2f8] sm:$0xf]
    %v865 = vld [vmem:[%s1 + $0x2fc] sm:$0xf]
    %v930 = vunpack.c.l.b16 %v802
    %v931 = vunpack.c.l.b16 %v803
    %v932 = vunpack.c.l.b16 %v804
    %v933 = vunpack.c.l.b16 %v805
    %v934 = vunpack.c.l.b16 %v806
    %v935 = vunpack.c.l.b16 %v807
    %v936 = vunpack.c.l.b16 %v808
    %v937 = vunpack.c.l.b16 %v809
    %v938 = vunpack.c.l.b16 %v810
    %v939 = vunpack.c.l.b16 %v811
    %v940 = vunpack.c.l.b16 %v812
    %v941 = vunpack.c.l.b16 %v813
    %v942 = vunpack.c.l.b16 %v814
    %v943 = vunpack.c.l.b16 %v815
    %v944 = vunpack.c.l.b16 %v816
    %v945 = vunpack.c.l.b16 %v817
    %v946 = vunpack.c.l.b16 %v818
    %v947 = vunpack.c.l.b16 %v819
    %v948 = vunpack.c.l.b16 %v820
    %v949 = vunpack.c.l.b16 %v821
    %v950 = vunpack.c.l.b16 %v822
    %v951 = vunpack.c.l.b16 %v823
    %v952 = vunpack.c.l.b16 %v824
    %v953 = vunpack.c.l.b16 %v825
    %v954 = vunpack.c.l.b16 %v826
    %v955 = vunpack.c.l.b16 %v827
    %v956 = vunpack.c.l.b16 %v828
    %v957 = vunpack.c.l.b16 %v829
    %v958 = vunpack.c.l.b16 %v830
    %v959 = vunpack.c.l.b16 %v831
    %v960 = vunpack.c.l.b16 %v832
    %v961 = vunpack.c.l.b16 %v833
    %v962 = vunpack.c.l.b16 %v834
    %v963 = vunpack.c.l.b16 %v835
    %v964 = vunpack.c.l.b16 %v836
    %v965 = vunpack.c.l.b16 %v837
    %v966 = vunpack.c.l.b16 %v838
    %v967 = vunpack.c.l.b16 %v839
    %v968 = vunpack.c.l.b16 %v840
    %v969 = vunpack.c.l.b16 %v841
    %v970 = vunpack.c.l.b16 %v842
    %v971 = vunpack.c.l.b16 %v843
    %v972 = vunpack.c.l.b16 %v844
    %v973 = vunpack.c.l.b16 %v845
    %v974 = vunpack.c.l.b16 %v846
    %v975 = vunpack.c.l.b16 %v847
    %v976 = vunpack.c.l.b16 %v848
    %v977 = vunpack.c.l.b16 %v849
    %v978 = vunpack.c.l.b16 %v850
    %v979 = vunpack.c.l.b16 %v851
    %v980 = vunpack.c.l.b16 %v852
    %v981 = vunpack.c.l.b16 %v853
    %v982 = vunpack.c.l.b16 %v854
    %v983 = vunpack.c.l.b16 %v855
    %v984 = vunpack.c.l.b16 %v856
    %v985 = vunpack.c.l.b16 %v857
    %v986 = vunpack.c.l.b16 %v858
    %v987 = vunpack.c.l.b16 %v859
    %v988 = vunpack.c.l.b16 %v860
    %v989 = vunpack.c.l.b16 %v861
    %v990 = vunpack.c.l.b16 %v862
    %v991 = vunpack.c.l.b16 %v863
    %v992 = vunpack.c.l.b16 %v864
    %v993 = vunpack.c.l.b16 %v865
    %v994 = vpack.c.b16 %v931, %v930
    %v995 = vpack.c.b16 %v933, %v932
    %v996 = vpack.c.b16 %v935, %v934
    %v997 = vpack.c.b16 %v937, %v936
    %v998 = vpack.c.b16 %v939, %v938
    %v999 = vpack.c.b16 %v941, %v940
    %v1000 = vpack.c.b16 %v943, %v942
    %v1001 = vpack.c.b16 %v945, %v944
    %v1002 = vpack.c.b16 %v947, %v946
    %v1003 = vpack.c.b16 %v949, %v948
    %v1004 = vpack.c.b16 %v951, %v950
    %v1005 = vpack.c.b16 %v953, %v952
    %v1006 = vpack.c.b16 %v955, %v954
    %v1007 = vpack.c.b16 %v957, %v956
    %v1008 = vpack.c.b16 %v959, %v958
    %v1009 = vpack.c.b16 %v961, %v960
    %v1010 = vpack.c.b16 %v963, %v962
    %v1011 = vpack.c.b16 %v965, %v964
    %v1012 = vpack.c.b16 %v967, %v966
    %v1013 = vpack.c.b16 %v969, %v968
    %v1014 = vpack.c.b16 %v971, %v970
    %v1015 = vpack.c.b16 %v973, %v972
    %v1016 = vpack.c.b16 %v975, %v974
    %v1017 = vpack.c.b16 %v977, %v976
    %v1018 = vpack.c.b16 %v979, %v978
    %v1019 = vpack.c.b16 %v981, %v980
    %v1020 = vpack.c.b16 %v983, %v982
    %v1021 = vpack.c.b16 %v985, %v984
    %v1022 = vpack.c.b16 %v987, %v986
    %v1023 = vpack.c.b16 %v989, %v988
    %v1024 = vpack.c.b16 %v991, %v990
    %v1025 = vpack.c.b16 %v993, %v992
    %1058 = vmatprep.subr.bf16.mxu0 0
    %1059 = vmatpush1.bf16.msra.mxu0 %v994
    %1060 = vmatprep.subr.bf16.mxu0 0
    %1061 = vmatpush1.bf16.msra.mxu0 %v995
    %1062 = vmatprep.subr.bf16.mxu0 0
    %1063 = vmatpush1.bf16.msra.mxu0 %v996
    %1064 = vmatprep.subr.bf16.mxu0 0
    %1065 = vmatpush1.bf16.msra.mxu0 %v997
    %1066 = vmatprep.subr.bf16.mxu0 0
    %1067 = vmatpush1.bf16.msra.mxu0 %v998
    %1068 = vmatprep.subr.bf16.mxu0 0
    %1069 = vmatpush1.bf16.msra.mxu0 %v999
    %1070 = vmatprep.subr.bf16.mxu0 0
    %1071 = vmatpush1.bf16.msra.mxu0 %v1000
    %1072 = vmatprep.subr.bf16.mxu0 0
    %1073 = vmatpush1.bf16.msra.mxu0 %v1001
    %1074 = vmatprep.subr.bf16.mxu0 0
    %1075 = vmatpush1.bf16.msra.mxu0 %v1002
    %1076 = vmatprep.subr.bf16.mxu0 0
    %1077 = vmatpush1.bf16.msra.mxu0 %v1003
    %1078 = vmatprep.subr.bf16.mxu0 0
    %1079 = vmatpush1.bf16.msra.mxu0 %v1004
    %1080 = vmatprep.subr.bf16.mxu0 0
    %1081 = vmatpush1.bf16.msra.mxu0 %v1005
    %1082 = vmatprep.subr.bf16.mxu0 0
    %1083 = vmatpush1.bf16.msra.mxu0 %v1006
    %1084 = vmatprep.subr.bf16.mxu0 0
    %1085 = vmatpush1.bf16.msra.mxu0 %v1007
    %1086 = vmatprep.subr.bf16.mxu0 0
    %1087 = vmatpush1.bf16.msra.mxu0 %v1008
    %1088 = vmatprep.subr.bf16.mxu0 0
    %1089 = vmatpush1.bf16.msra.mxu0 %v1009
    %1090 = vmatprep.mubr.bf16.mxu0 %v799
    %1091 = vmatmul.mubr.bf16.gmra.mrb[0].mxu0 %v798
    %v1092 = vpop.f32.mrb[0].mxu0
    %v1093 = vadd.f32 0.0, %v1092
    %v1094 = vpop.f32.mrb[0].mxu0
    %v1095 = vpop.f32.mrb[0].mxu0
    %v1096 = vpop.f32.mrb[0].mxu0
    %1097 = vdwg.mxu0
    %1098 = vmatprep.subr.bf16.mxu0 0
    %1099 = vmatpush1.bf16.msra.mxu0 %v1010
    %1100 = vmatprep.subr.bf16.mxu0 0
    %1101 = vmatpush1.bf16.msra.mxu0 %v1011
    %1102 = vmatprep.subr.bf16.mxu0 0
    %1103 = vmatpush1.bf16.msra.mxu0 %v1012
    %1104 = vmatprep.subr.bf16.mxu0 0
    %1105 = vmatpush1.bf16.msra.mxu0 %v1013
    %1106 = vmatprep.subr.bf16.mxu0 0
    %1107 = vmatpush1.bf16.msra.mxu0 %v1014
    %1108 = vmatprep.subr.bf16.mxu0 0
    %1109 = vmatpush1.bf16.msra.mxu0 %v1015
    %1110 = vmatprep.subr.bf16.mxu0 0
    %1111 = vmatpush1.bf16.msra.mxu0 %v1016
    %1112 = vmatprep.subr.bf16.mxu0 0
    %1113 = vmatpush1.bf16.msra.mxu0 %v1017
    %1114 = vmatprep.subr.bf16.mxu0 0
    %1115 = vmatpush1.bf16.msra.mxu0 %v1018
    %1116 = vmatprep.subr.bf16.mxu0 0
    %1117 = vmatpush1.bf16.msra.mxu0 %v1019
    %1118 = vmatprep.subr.bf16.mxu0 0
    %1119 = vmatpush1.bf16.msra.mxu0 %v1020
    %1120 = vmatprep.subr.bf16.mxu0 0
    %1121 = vmatpush1.bf16.msra.mxu0 %v1021
    %1122 = vmatprep.subr.bf16.mxu0 0
    %1123 = vmatpush1.bf16.msra.mxu0 %v1022
    %1124 = vmatprep.subr.bf16.mxu0 0
    %1125 = vmatpush1.bf16.msra.mxu0 %v1023
    %1126 = vmatprep.subr.bf16.mxu0 0
    %1127 = vmatpush1.bf16.msra.mxu0 %v1024
    %1128 = vmatprep.subr.bf16.mxu0 0
    %1129 = vmatpush1.bf16.msra.mxu0 %v1025
    %1130 = vmatprep.mubr.bf16.mxu0 %v801
    %1131 = vmatmul.mubr.bf16.gmra.mrb[0].mxu0 %v800
    %v1132 = vpop.f32.mrb[0].mxu0
    %v1133 = vadd.f32 %v1093, %v1132
    %v1134 = vpop.f32.mrb[0].mxu0
    %v1135 = vpop.f32.mrb[0].mxu0
    %v1136 = vpop.f32.mrb[0].mxu0
    %1137 = vdwg.mxu0
    %v1138 = vadd.f32 %v759, %v1133
    %v1139 = vld [vmem:[%s0 + $0x18] sm:$0x3]
    %v1140 = vld [vmem:[%s0 + $0x32] sm:$0x3]
    %v1141 = vunpack.c.l.bf16 %v1139
    %v1142 = vunpack.c.l.bf16 %v1140
    %v1143 = vmul.f32 %v1141, 0.5
    %v1144 = vmul.f32 %v1142, 0.5
    %v1145 = vtanh.pop %v1143
    %v1146 = vtanh.pop %v1144
    %v1147 = vadd.f32 %v1145, 1.0
    %v1148 = vadd.f32 %v1146, 1.0
    %v1149 = vmul.f32 %v1147, 0.5
    %v1150 = vmul.f32 %v1148, 0.5
    %v1153 = vcombine.low %v1149, %v1150
    %v1155 = vpack.c.bf16 %v1153, %v1153
    %v1156 = vld [vmem:[%s1 + $0x300] sm:$0xf]
    %v1157 = vld [vmem:[%s1 + $0x304] sm:$0xf]
    %v1158 = vld [vmem:[%s1 + $0x308] sm:$0xf]
    %v1159 = vld [vmem:[%s1 + $0x30c] sm:$0xf]
    %v1164 = vunpack.c.l.b16 %v1156
    %v1165 = vunpack.c.l.b16 %v1157
    %v1166 = vunpack.c.l.b16 %v1158
    %v1167 = vunpack.c.l.b16 %v1159
    %v1168 = vpack.c.b16 %v1165, %v1164
    %v1169 = vpack.c.b16 %v1167, %v1166
    %vm1172 = vcmask 261120
    %v1174 = vsel %vm1172, %v1155, 0
    %1176 = vmatprep.subr.bf16.mxu0 0
    %1177 = vmatpush1.bf16.msra.mxu0 %v1168
    %1178 = vmatprep.subr.bf16.mxu0 0
    %1179 = vmatpush1.bf16.msra.mxu0 %v1169
    %1180 = vmatprep.subr.bf16.mxu0 0
    %1181 = vmatpush1.bf16.msra.mxu0 0
    %1182 = vmatprep.subr.bf16.mxu0 0
    %1183 = vmatpush1.bf16.msra.mxu0 0
    %1184 = vmatprep.subr.bf16.mxu0 0
    %1185 = vmatpush1.bf16.msra.mxu0 0
    %1186 = vmatprep.subr.bf16.mxu0 0
    %1187 = vmatpush1.bf16.msra.mxu0 0
    %1188 = vmatprep.subr.bf16.mxu0 0
    %1189 = vmatpush1.bf16.msra.mxu0 0
    %1190 = vmatprep.subr.bf16.mxu0 0
    %1191 = vmatpush1.bf16.msra.mxu0 0
    %1192 = vmatprep.subr.bf16.mxu0 0
    %1193 = vmatpush1.bf16.msra.mxu0 0
    %1194 = vmatprep.subr.bf16.mxu0 0
    %1195 = vmatpush1.bf16.msra.mxu0 0
    %1196 = vmatprep.subr.bf16.mxu0 0
    %1197 = vmatpush1.bf16.msra.mxu0 0
    %1198 = vmatprep.subr.bf16.mxu0 0
    %1199 = vmatpush1.bf16.msra.mxu0 0
    %1200 = vmatprep.subr.bf16.mxu0 0
    %1201 = vmatpush1.bf16.msra.mxu0 0
    %1202 = vmatprep.subr.bf16.mxu0 0
    %1203 = vmatpush1.bf16.msra.mxu0 0
    %1204 = vmatprep.subr.bf16.mxu0 0
    %1205 = vmatpush1.bf16.msra.mxu0 0
    %1206 = vmatprep.subr.bf16.mxu0 0
    %1207 = vmatpush1.bf16.msra.mxu0 0
    %1208 = vmatprep.mubr.bf16.mxu0 0
    %1209 = vmatmul.mubr.bf16.gmra.mrb[0].mxu0 %v1174
    %v1210 = vpop.f32.mrb[0].mxu0
    %v1211 = vadd.f32 0.0, %v1210
    %v1212 = vpop.f32.mrb[0].mxu0
    %v1213 = vpop.f32.mrb[0].mxu0
    %v1214 = vpop.f32.mrb[0].mxu0
    %1215 = vdwg.mxu0
    %v1216 = vadd.f32 %v1138, %v1211
    %v1217 = vld [vmem:[%s2] sm:$0x1]
    %v1219 = vlaneseq
    %v1220 = vshrl.u32 %v1219, 7
    %v1221 = vsub.s32 0, %v1220
    %v1222 = vrot.slane %v1217, %v1221
    %v1224 = vadd.f32 %v1216, %v1222
    %1225 = vst [vmem:[#allocation2] sm:$0xff] %v1224
    // Predicated region
    $region14: #{ms_task_forward.1} parent=1 // pred_check
      _
    $region15: #{ms_task_forward.1} parent=1 // pred_check_branch
      %1227 = sbr.rel (0) target = $region17
    $region16: #{ms_task_forward.1} parent=1 // pred_region
      %s1229 = ssub.s32 128, 64
      %1230 = vsyncadd [#allocation3], %s1229
      %s1231 = sshll.u32 [#allocation2], 4
      %s1232 = int_to_ptr.vmem [resolvable:$true] %s1231
      %1237 = dma.vmem_to_hbm [thread:$0]  %s1232, 64, %s3, [#allocation3], 64, 64, 4
    $region17: #{ms_task_forward.1} parent=1 // pred_fallthru
      _
    // Predicated region
    $region18: #{ms_task_forward.1} parent=1 // pred_check
      _
    $region19: #{ms_task_forward.1} parent=1 // pred_check_branch
      %1239 = sbr.rel (0) target = $region21
    $region20: #{ms_task_forward.1} parent=1 // pred_region
      %1240 = dma.done [#allocation3], 128
    $region21: #{ms_task_forward.1} parent=1 // pred_fallthru
      _
    %1241 = vsyncpa [#allocation3], 1

</llo_original>
